<compile_context>
chip_gen: v6e
topology: v6e:2x2x1
jax: 0.10.0
libtpu: 0.0.40
codegen_flags: <defaults>
</compile_context>

<pallas_src>
import jax
import jax.numpy as jnp
from jax.experimental import pallas as pl
from jax.experimental.pallas import tpu as pltpu

EPS = 1e-5


def layernorm_kernel(x_ref, scale_ref, shift_ref, o_ref):
    # x_ref: (TB, D) tile in VMEM; scale/shift: (1, D), broadcast over rows.
    inv_d = jnp.float32(1.0 / x_ref.shape[-1])

    # Pass 1: row mean. Cast happens inside the reduce (no requirement to keep
    # a separate f32 tile copy alive just for the statistics for 16-bit inputs).
    mean = jnp.sum(x_ref[...].astype(jnp.float32), axis=-1, keepdims=True) * inv_d

    # Pass 2: centered sum of squares (biased variance). The tile is already
    # VMEM-resident, so the second sweep costs no HBM traffic, and it avoids
    # the catastrophic cancellation of the one-pass E[x^2] - mean^2 formula.
    xc = x_ref[...].astype(jnp.float32) - mean
    var = jnp.sum(xc * xc, axis=-1, keepdims=True) * inv_d

    # rsqrt lowers to the EUP slot (idle in this mem-bound kernel).
    inv_std = jax.lax.rsqrt(var + EPS)

    g = scale_ref[...].astype(jnp.float32)
    b = shift_ref[...].astype(jnp.float32)
    o_ref[...] = (g * (xc * inv_std) + b).astype(o_ref.dtype)


def _choose_row_tile(B, D, itemsize):
    """Row tile sized by a ~4 MiB-per-input-buffer target (so double-buffered
    input + output ~= 16 MiB), with dtype-aware sublane alignment and a
    guaranteed >= 2-step grid whenever B allows (megacore on v7x)."""
    if itemsize >= 4:
        align = 8           # f32
    elif itemsize == 2:
        align = 16          # bf16 packs 2 rows / sublane
    else:
        align = 32          # int8 / fp8 pack 4 rows / sublane

    target_block_bytes = 4 * 1024 * 1024
    per_row = max(D * itemsize, 1)
    tb = max(align, target_block_bytes // per_row)
    tb = (tb // align) * align

    if tb < B:
        return tb

    # Whole batch fits in one block: split into 2 aligned blocks when possible
    # so the "parallel" batch axis shards across both v7x TensorCores.
    if B >= 2 * align:
        return (((B + 1) // 2) + align - 1) // align * align  # always < B here
    return B  # tiny batch: single full block (block dims == array dims is OK)


def layer_norm(x, scale, shift):
    """x: (B, D); scale, shift: (D,). Matches the torch LayerNorm forward."""
    B, D = x.shape
    scale2d = scale.reshape(1, D)
    shift2d = shift.reshape(1, D)

    itemsize = jnp.dtype(x.dtype).itemsize
    tb = _choose_row_tile(B, D, itemsize)
    grid = (pl.cdiv(B, tb),)

    # D is kept un-tiled (full last dim) so the row reduction stays in one
    # block. When B % tb != 0 the padded rows of the last block read undefined
    # data; that is safe because every statistic here is strictly per-row and
    # Pallas discards the out-of-bounds output rows.
    # TODO(synk): masked lane-padded-D path for hot shapes with D < 128
    # (lane-sparse output -> vst.msk partial stores).
    cost = pl.CostEstimate(
        flops=8 * B * D,
        transcendentals=B,
        bytes_accessed=2 * B * D * itemsize + 2 * D * jnp.dtype(scale.dtype).itemsize,
    )

    return pl.pallas_call(
        layernorm_kernel,
        out_shape=jax.ShapeDtypeStruct((B, D), x.dtype),
        grid=grid,
        in_specs=[
            pl.BlockSpec((tb, D), lambda i: (i, 0)),
            pl.BlockSpec((1, D), lambda i: (0, 0)),
            pl.BlockSpec((1, D), lambda i: (0, 0)),
        ],
        out_specs=pl.BlockSpec((tb, D), lambda i: (i, 0)),
        compiler_params=pltpu.CompilerParams(
            dimension_semantics=("parallel",),       # megacore sharding on v7x
            vmem_limit_bytes=48 * 1024 * 1024,       # headroom on v7x (64 MiB),
                                                     # lifts v5e's 16 MiB default
        ),
        cost_estimate=cost,
    )(x, scale2d, shift2d)


def _ref_layer_norm(x, scale, shift):
    mean = jnp.mean(x, axis=-1, keepdims=True)
    var = jnp.mean((x - mean) ** 2, axis=-1, keepdims=True)
    return scale * ((x - mean) / jnp.sqrt(var + EPS)) + shift


if __name__ == "__main__":
    key = jax.random.PRNGKey(0)

    # Shape from the original module: batch_example = torch.randn(2, 5)
    batch, emb_dim = 2, 5
    x = jax.random.normal(key, (batch, emb_dim), dtype=jnp.float32)
    scale = jnp.ones((emb_dim,), dtype=jnp.float32)   # nn.Parameter(torch.ones)
    shift = jnp.zeros((emb_dim,), dtype=jnp.float32)  # nn.Parameter(torch.zeros)

    out = jax.block_until_ready(layer_norm(x, scale, shift))
    ref = _ref_layer_norm(x, scale, shift)
    assert jnp.allclose(out, ref, atol=1e-4, rtol=1e-4), "mismatch (2,5)"

    # Exercise the tiled / pipelined, lane-dense path (non-trivial affine,
    # large mean offset to stress the two-pass variance numerics).
    k2, k3, k4 = jax.random.split(jax.random.PRNGKey(1), 3)
    B2, D2 = 256, 512
    x2 = jax.random.normal(k2, (B2, D2), dtype=jnp.float32) * 3.0 + 100.0
    s2 = 1.0 + 0.1 * jax.random.normal(k3, (D2,), dtype=jnp.float32)
    b2 = 0.1 * jax.random.normal(k4, (D2,), dtype=jnp.float32)
    out2 = jax.block_until_ready(layer_norm(x2, s2, b2))
    ref2 = _ref_layer_norm(x2, s2, b2)
    assert jnp.allclose(out2, ref2, atol=1e-4, rtol=1e-4), "mismatch (256,512)"

    print("KERNEL_OK")
</pallas_src>

<mosaic_0001>
module attributes {stable_mosaic.version = 11 : i64} {
  func.func @layernorm_kernel(%arg0: i32, %arg1: memref<2x5xf32, #tpu.memory_space<vmem>>, %arg2: memref<1x5xf32, #tpu.memory_space<vmem>>, %arg3: memref<1x5xf32, #tpu.memory_space<vmem>>, %arg4: memref<2x5xf32, #tpu.memory_space<vmem>>) attributes {dimension_semantics = [#tpu.dimension_semantics<parallel>], iteration_bounds = array<i64: 1>, scalar_prefetch = 0 : i64, scratch_operands = 0 : i64, tpu.core_type = #tpu.core_type<tc>, window_params = [{transform_indices = @transform_0, window_bounds = array<i64: 2, 5>}, {pipeline_mode = #tpu.pipeline_mode<synchronous>, transform_indices = @transform_1, window_bounds = array<i64: 1, 5>}, {pipeline_mode = #tpu.pipeline_mode<synchronous>, transform_indices = @transform_2, window_bounds = array<i64: 1, 5>}, {transform_indices = @transform_3, window_bounds = array<i64: 2, 5>}]} {
    %c0 = arith.constant 0 : index
    %c0_0 = arith.constant 0 : index
    %0 = vector.load %arg1[%c0, %c0_0] : memref<2x5xf32, #tpu.memory_space<vmem>>, vector<2x5xf32>
    %cst = arith.constant dense<0.000000e+00> : vector<2xf32>
    %1 = vector.multi_reduction <add>, %0, %cst [1] : vector<2x5xf32> to vector<2xf32>
    %2 = vector.shape_cast %1 : vector<2xf32> to vector<2x1xf32>
    %cst_1 = arith.constant 2.000000e-01 : f32
    %3 = vector.broadcast %cst_1 : f32 to vector<2x1xf32>
    %4 = arith.mulf %2, %3 : vector<2x1xf32>
    %c0_2 = arith.constant 0 : index
    %c0_3 = arith.constant 0 : index
    %5 = vector.load %arg1[%c0_2, %c0_3] : memref<2x5xf32, #tpu.memory_space<vmem>>, vector<2x5xf32>
    %6 = vector.broadcast %4 : vector<2x1xf32> to vector<2x5xf32>
    %7 = arith.subf %5, %6 : vector<2x5xf32>
    %8 = arith.mulf %7, %7 : vector<2x5xf32>
    %cst_4 = arith.constant dense<0.000000e+00> : vector<2xf32>
    %9 = vector.multi_reduction <add>, %8, %cst_4 [1] : vector<2x5xf32> to vector<2xf32>
    %10 = vector.shape_cast %9 : vector<2xf32> to vector<2x1xf32>
    %cst_5 = arith.constant 2.000000e-01 : f32
    %11 = vector.broadcast %cst_5 : f32 to vector<2x1xf32>
    %12 = arith.mulf %10, %11 : vector<2x1xf32>
    %cst_6 = arith.constant 9.99999974E-6 : f32
    %13 = vector.broadcast %cst_6 : f32 to vector<2x1xf32>
    %14 = arith.addf %12, %13 : vector<2x1xf32>
    %15 = math.rsqrt %14 : vector<2x1xf32>
    %c0_7 = arith.constant 0 : index
    %c0_8 = arith.constant 0 : index
    %16 = vector.load %arg2[%c0_7, %c0_8] : memref<1x5xf32, #tpu.memory_space<vmem>>, vector<1x5xf32>
    %c0_9 = arith.constant 0 : index
    %c0_10 = arith.constant 0 : index
    %17 = vector.load %arg3[%c0_9, %c0_10] : memref<1x5xf32, #tpu.memory_space<vmem>>, vector<1x5xf32>
    %18 = vector.broadcast %15 : vector<2x1xf32> to vector<2x5xf32>
    %19 = arith.mulf %7, %18 : vector<2x5xf32>
    %20 = vector.broadcast %16 : vector<1x5xf32> to vector<2x5xf32>
    %21 = arith.mulf %20, %19 : vector<2x5xf32>
    %22 = vector.broadcast %17 : vector<1x5xf32> to vector<2x5xf32>
    %23 = arith.addf %21, %22 : vector<2x5xf32>
    %c0_11 = arith.constant 0 : index
    %c0_12 = arith.constant 0 : index
    %24 = vector.load %arg4[%c0_11, %c0_12] : memref<2x5xf32, #tpu.memory_space<vmem>>, vector<2x5xf32>
    tpu.vector_store %arg4[%c0_11, %c0_12], %23 {strides = array<i32>} : memref<2x5xf32, #tpu.memory_space<vmem>>, vector<2x5xf32>,
    return
  }
  func.func @transform_0(%arg0: i32) -> (i32, i32) {
    %c0_i32 = arith.constant 0 : i32
    %c0_i32_0 = arith.constant 0 : i32
    return %arg0, %c0_i32 : i32, i32
  }
  func.func @transform_1(%arg0: i32) -> (i32, i32) {
    %c0_i32 = arith.constant 0 : i32
    %c0_i32_0 = arith.constant 0 : i32
    %c0_i32_1 = arith.constant 0 : i32
    return %c0_i32, %c0_i32_0 : i32, i32
  }
  func.func @transform_2(%arg0: i32) -> (i32, i32) {
    %c0_i32 = arith.constant 0 : i32
    %c0_i32_0 = arith.constant 0 : i32
    %c0_i32_1 = arith.constant 0 : i32
    return %c0_i32, %c0_i32_0 : i32, i32
  }
  func.func @transform_3(%arg0: i32) -> (i32, i32) {
    %c0_i32 = arith.constant 0 : i32
    %c0_i32_0 = arith.constant 0 : i32
    return %arg0, %c0_i32 : i32, i32
  }
}

</mosaic_0001>

<llo_original>
// kernel: tpu_custom_call.1
$region0: #{tpu_custom_call.1}
  #allocation0 [shape = 'u32[]', space=smem, size = 0x4, offset = 0x4, fixed_abs, tag = 'smem constant byte address 0x4 - core index']
  #allocation1 [shape = 'u32[144,128]{1,0:T(1,128)}', space=vmem, size = 0x12000, scoped, tag = 'internal scratch']
  %s0 = inlined_call_operand.hbm [shape: f32[2,5], index: 0, kind: input, shape index: {}]
  %s1 = inlined_call_operand.vmem [shape: f32[1,5], index: 1, kind: input, shape index: {}]
  %s2 = inlined_call_operand.vmem [shape: f32[1,5], index: 2, kind: input, shape index: {}]
  %s3 = inlined_call_operand.hbm [shape: f32[2,5], index: 3, kind: output, shape index: {}]
  %s4 = sld [smem:[#allocation0]]
  $region26: #{tpu_custom_call.1} parent=0
    _
  %s6 = ssub.s32 1, %s4
  %s7 = scalar_select 0, %s6, %s4
  $region1: #{tpu_custom_call.1} parent=0
    #allocation2 [shape = 'u8[1024]{0}', space=vmem, size = 0x400, scoped, tag = 'input window, operand 0, single buffered']
    #allocation3 [shape = 's32[1]{0}', space=sflag, size = 0x4, scoped, tag = 'scoped memory for tpu_custom_call.1']
    #allocation4 [shape = 's32[1]{0}', space=sflag, size = 0x4, scoped, tag = 'scoped memory for tpu_custom_call.1']
    #allocation5 [shape = 'u8[1024]{0}', space=vmem, size = 0x400, scoped, tag = 'output window, operand 0, single buffered']
    %8 = vsyncpa [#allocation3], 0
    %9 = vsyncpa [#allocation4], 0
    // Predicated region
    $region2: #{tpu_custom_call.1} parent=1 // pred_check
      _
    $region3: #{tpu_custom_call.1} parent=1 // pred_check_branch
      %11 = sbr.rel (0) target = $region5
    $region4: #{tpu_custom_call.1} parent=1 // pred_region
      %s13 = ssub.s32 32, 32
      %14 = vsyncadd [#allocation3], %s13
      %s16 = sshll.u32 [#allocation2], 4
      %s17 = int_to_ptr.vmem [resolvable:$true] %s16
      %19 = dma.hbm_to_vmem [thread:$0]  %s0, 32, %s17, [#allocation3]
    $region5: #{tpu_custom_call.1} parent=1 // pred_fallthru
      _
    // Predicated region
    $region6: #{tpu_custom_call.1} parent=1 // pred_check
      _
    $region7: #{tpu_custom_call.1} parent=1 // pred_check_branch
      %21 = sbr.rel (0) target = $region9
    $region8: #{tpu_custom_call.1} parent=1 // pred_region
      _
    $region9: #{tpu_custom_call.1} parent=1 // pred_fallthru
      _
    // Predicated region
    $region10: #{tpu_custom_call.1} parent=1 // pred_check
      _
    $region11: #{tpu_custom_call.1} parent=1 // pred_check_branch
      %23 = sbr.rel (0) target = $region13
    $region12: #{tpu_custom_call.1} parent=1 // pred_region
      _
    $region13: #{tpu_custom_call.1} parent=1 // pred_fallthru
      _
    // Predicated region
    $region14: #{tpu_custom_call.1} parent=1 // pred_check
      _
    $region15: #{tpu_custom_call.1} parent=1 // pred_check_branch
      %25 = sbr.rel (0) target = $region17
    $region16: #{tpu_custom_call.1} parent=1 // pred_region
      %26 = dma.done [#allocation3], 32
    $region17: #{tpu_custom_call.1} parent=1 // pred_fallthru
      _
    %v27 = vld [vmem:[#allocation2] sm:$0x3]
    %vm28 = vcmask 33792
    %v29 = vsel %vm28, %v27, 0.0
    %30 = vadd.xlane.f32.xlu0 %v29
    %v31 = vpop.xlane.xlu0 %30
    %v32 = vmul.f32 %v31, 0.2
    %v33 = vsub.f32 %v27, %v32
    %v34 = vmul.f32 %v33, %v33
    %v35 = vsel %vm28, %v34, 0.0
    %36 = vadd.xlane.f32.xlu0 %v35
    %v37 = vpop.xlane.xlu0 %36
    %v38 = vmul.f32 %v37, 0.2
    %v39 = vadd.f32 %v38, 1e-05
    %v40 = vrsqrt.pop %v39
    %v41 = vld [vmem:[%s1] sm:$0x1]
    %v42 = vld [vmem:[%s2] sm:$0x1]
    %v43 = vmul.f32 %v33, %v40
    %v45 = vlaneseq
    %v46 = vshrl.u32 %v45, 7
    %v47 = vsub.s32 0, %v46
    %v48 = vrot.slane %v41, %v47
    %v50 = vmul.f32 %v48, %v43
    %v52 = vlaneseq
    %v53 = vshrl.u32 %v52, 7
    %v54 = vsub.s32 0, %v53
    %v55 = vrot.slane %v42, %v54
    %v57 = vadd.f32 %v50, %v55
    %58 = vst.msk [vmem:[#allocation5] sm:$0x3] %vm28, %v57
    // Predicated region
    $region18: #{tpu_custom_call.1} parent=1 // pred_check
      _
    $region19: #{tpu_custom_call.1} parent=1 // pred_check_branch
      %60 = sbr.rel (0) target = $region21
    $region20: #{tpu_custom_call.1} parent=1 // pred_region
      %s62 = ssub.s32 32, 32
      %63 = vsyncadd [#allocation4], %s62
      %s65 = sshll.u32 [#allocation5], 4
      %s66 = int_to_ptr.vmem [resolvable:$true] %s65
      %68 = dma.vmem_to_hbm [thread:$0]  %s66, 32, %s3, [#allocation4]
    $region21: #{tpu_custom_call.1} parent=1 // pred_fallthru
      _
    // Predicated region
    $region22: #{tpu_custom_call.1} parent=1 // pred_check
      _
    $region23: #{tpu_custom_call.1} parent=1 // pred_check_branch
      %70 = sbr.rel (0) target = $region25
    $region24: #{tpu_custom_call.1} parent=1 // pred_region
      %71 = dma.done [#allocation4], 32
    $region25: #{tpu_custom_call.1} parent=1 // pred_fallthru
      _
    %72 = vsyncpa [#allocation3], 1
    %73 = vsyncpa [#allocation4], 1

</llo_original>
